<compile_context>
chip_gen: v7x
topology: tpu7x:2x2x1
jax: 0.10.0
libtpu: 0.0.40
codegen_flags: <defaults>
</compile_context>

<pallas_src>
import functools
import math

import jax
import jax.numpy as jnp
from jax import lax
from jax.experimental import pallas as pl
from jax.experimental.pallas import tpu as pltpu

LANES = 128
MAX_TILE_ROWS = 4096      # 4096 x 128 f32 = 2 MiB per input block


def _bce_of_focal_logits(x, t, gamma):
    """Elementwise BCEWithLogits((1 - sigmoid(x))**gamma * logsigmoid(x), t) in f32."""
    # One exp + one log give both 1 - sigmoid(x) and log(sigmoid(x)).
    e = jnp.exp(-jnp.abs(x))
    log1pe = jnp.log1p(e)
    logsig = jnp.minimum(x, 0.0) - log1pe                  # log(sigmoid(x)) <= 0
    # 1 - sigmoid(x) in [0,1]; exact reciprocal-multiply instead of a divide.
    q = jnp.where(x >= 0.0, e, 1.0) * pl.reciprocal(1.0 + e, approx=False)

    # q ** gamma: integer powers as repeated VPU multiplies (gamma=2 default);
    # avoids pow = exp(gamma*log(q)) and its log(0) corner when q -> 0.
    if float(gamma).is_integer() and 0 <= int(gamma) <= 16:
        g = int(gamma)
        p = jnp.ones_like(q) if g == 0 else q
        for _ in range(max(g - 1, 0)):
            p = p * q
    else:
        p = q ** jnp.float32(gamma)

    z = p * logsig                                         # z <= 0 always
    # BCEWithLogits(z, t) with z <= 0:  max(z,0) = 0, |z| = -z
    return jnp.log1p(jnp.exp(z)) - z * t


def _fold_to_8x128(v):
    # (block_rows, 128) -> (8, 128) partial sums: pure vreg-to-vreg VPU adds.
    rows, lanes = v.shape
    return jnp.sum(v.reshape(rows // 8, 8, lanes), axis=0)


def _focal_bce_kernel(x_ref, t_ref, o_ref, *, gamma, rows_total, block_rows,
                      last_block_partial):
    i = pl.program_id(0)

    @pl.when(i == 0)
    def _():
        o_ref[...] = jnp.zeros_like(o_ref)

    x = x_ref[...].astype(jnp.float32)
    t = t_ref[...].astype(jnp.float32)
    bce = _bce_of_focal_logits(x, t, gamma)

    if not last_block_partial:
        # Common path: every block is fully in-bounds -> no mask at all.
        o_ref[...] += _fold_to_8x128(bce)
    else:
        last = pl.num_programs(0) - 1

        @pl.when(i < last)
        def _():
            o_ref[...] += _fold_to_8x128(bce)

        @pl.when(i == last)
        def _():
            # Partial edge block: rows >= rows_valid hold undefined VMEM data.
            # Keep the select form so possible NaN/Inf never propagates.
            rows_valid = rows_total - i * block_rows       # small, int32-safe
            rid = lax.broadcasted_iota(jnp.int32, bce.shape, 0)
            o_ref[...] += _fold_to_8x128(jnp.where(rid < rows_valid, bce, 0.0))


def focal_loss_2d(inputs, targets, gamma=2):
    """JAX/Pallas equivalent of FocalLoss2d(gamma).forward(inputs, targets)."""
    assert inputs.shape == targets.shape
    n_elems = inputs.size
    assert n_elems > 0

    flat_x = inputs.reshape(-1)
    flat_t = targets.reshape(-1)

    # Lane-dense (rows, 128) slab.  Pad only to the next multiple of 128
    # (and at least 8 rows); pad elements are x=0, t=0 and their constant
    # contribution is subtracted below.  When n_elems % 128 == 0 and
    # n_elems >= 1024 this is a free metadata reshape (no HBM copy).
    pad_to = max(pl.cdiv(n_elems, LANES) * LANES, 8 * LANES)
    pad = pad_to - n_elems
    if pad:
        flat_x = jnp.pad(flat_x, (0, pad))
        flat_t = jnp.pad(flat_t, (0, pad))
    rows = pad_to // LANES
    x2d = flat_x.reshape(rows, LANES)
    t2d = flat_t.reshape(rows, LANES)

    # Block rows: multiple of 8, never larger than the array; the ragged tail
    # (rows % block_rows) is a Pallas partial edge block masked in-kernel.
    block_rows = min(MAX_TILE_ROWS, (rows // 8) * 8)
    num_blocks = pl.cdiv(rows, block_rows)
    last_block_partial = (rows % block_rows) != 0

    kernel = functools.partial(
        _focal_bce_kernel, gamma=gamma, rows_total=int(rows),
        block_rows=int(block_rows),
        last_block_partial=bool(last_block_partial))

    in_spec = pl.BlockSpec((block_rows, LANES), lambda i: (i, 0))

    partial = pl.pallas_call(
        kernel,
        out_shape=jax.ShapeDtypeStruct((8, LANES), jnp.float32),
        grid=(num_blocks,),
        in_specs=[in_spec, in_spec],
        out_specs=pl.BlockSpec((8, LANES), lambda i: (0, 0)),
        compiler_params=pltpu.CompilerParams(
            dimension_semantics=("arbitrary",)),
    )(x2d, t2d)

    total = jnp.sum(partial)
    if pad:
        # Pad elements are x=0, t=0:
        #   z0   = (1 - sigmoid(0))**gamma * logsigmoid(0) = 0.5**gamma * ln(0.5)
        #   bce0 = log1p(exp(z0))                            (t=0, z0 <= 0)
        z0 = (0.5 ** float(gamma)) * math.log(0.5)
        bce0 = math.log1p(math.exp(z0))
        total = total - jnp.float32(pad * bce0)
    return total / jnp.float32(n_elems)


def _reference(inputs, targets, gamma=2):
    x = inputs.astype(jnp.float32)
    t = targets.astype(jnp.float32)
    s = jax.nn.sigmoid(x)
    z = (1.0 - s) ** gamma * jax.nn.log_sigmoid(x)
    bce = jnp.maximum(z, 0.0) - z * t + jnp.log1p(jnp.exp(-jnp.abs(z)))
    return jnp.mean(bce)


if __name__ == "__main__":
    key = jax.random.PRNGKey(0)
    k1, k2, k3, k4 = jax.random.split(key, 4)

    # NCHW logits and binary targets, small shapes (clean 128-divisible case).
    x = jax.random.normal(k1, (2, 4, 16, 16), dtype=jnp.float32)
    t = (jax.random.uniform(k2, (2, 4, 16, 16)) > 0.5).astype(jnp.float32)
    loss = focal_loss_2d(x, t, gamma=2)
    jax.block_until_ready(loss)
    ref = _reference(x, t, gamma=2)
    assert jnp.allclose(loss, ref, atol=1e-5, rtol=1e-5), (loss, ref)

    # Ragged case: exercises the minimal-pad correction, multi-block
    # accumulation, and the masked partial edge block.
    x2 = jax.random.normal(k3, (1, 3, 23, 31), dtype=jnp.float32)
    t2 = (jax.random.uniform(k4, (1, 3, 23, 31)) > 0.5).astype(jnp.float32)
    loss2 = focal_loss_2d(x2, t2, gamma=2)
    jax.block_until_ready(loss2)
    ref2 = _reference(x2, t2, gamma=2)
    assert jnp.allclose(loss2, ref2, atol=1e-5, rtol=1e-5), (loss2, ref2)

    print("KERNEL_OK")
</pallas_src>

<mosaic_0001>
module attributes {stable_mosaic.version = 11 : i64} {
  func.func @_focal_bce_kernel(%arg0: i32, %arg1: memref<16x128xf32, #tpu.memory_space<vmem>>, %arg2: memref<16x128xf32, #tpu.memory_space<vmem>>, %arg3: memref<8x128xf32, #tpu.memory_space<vmem>>) attributes {dimension_semantics = [#tpu.dimension_semantics<arbitrary>], iteration_bounds = array<i64: 1>, scalar_prefetch = 0 : i64, scratch_operands = 0 : i64, tpu.core_type = #tpu.core_type<tc>, window_params = [{transform_indices = @transform_0, window_bounds = array<i64: 16, 128>}, {transform_indices = @transform_1, window_bounds = array<i64: 16, 128>}, {pipeline_mode = #tpu.pipeline_mode<synchronous>, transform_indices = @transform_2, window_bounds = array<i64: 8, 128>}]} {
    %c0_i32 = arith.constant 0 : i32
    %0 = arith.cmpi eq, %arg0, %c0_i32 : i32
    %1 = arith.extui %0 : i1 to i32
    %c0_i32_0 = arith.constant 0 : i32
    %2 = arith.cmpi ne, %1, %c0_i32_0 : i32
    scf.if %2 {
      %cst_13 = arith.constant 0.000000e+00 : f32
      %32 = vector.broadcast %cst_13 : f32 to vector<8x128xf32>
      %c0_14 = arith.constant 0 : index
      %c0_15 = arith.constant 0 : index
      %33 = vector.load %arg3[%c0_14, %c0_15] : memref<8x128xf32, #tpu.memory_space<vmem>>, vector<8x128xf32>
      tpu.vector_store %arg3[%c0_14, %c0_15], %32 {strides = array<i32>} : memref<8x128xf32, #tpu.memory_space<vmem>>, vector<8x128xf32>,
    } else {
    }
    %c0 = arith.constant 0 : index
    %c0_1 = arith.constant 0 : index
    %3 = vector.load %arg1[%c0, %c0_1] : memref<16x128xf32, #tpu.memory_space<vmem>>, vector<16x128xf32>
    %c0_2 = arith.constant 0 : index
    %c0_3 = arith.constant 0 : index
    %4 = vector.load %arg2[%c0_2, %c0_3] : memref<16x128xf32, #tpu.memory_space<vmem>>, vector<16x128xf32>
    %5 = math.absf %3 : vector<16x128xf32>
    %cst = arith.constant 0.000000e+00 : f32
    %6 = vector.broadcast %cst : f32 to vector<16x128xf32>
    %7 = arith.subf %6, %5 : vector<16x128xf32>
    %8 = math.exp %7 : vector<16x128xf32>
    %9 = math.log1p %8 : vector<16x128xf32>
    %cst_4 = arith.constant 0.000000e+00 : f32
    %10 = vector.broadcast %cst_4 : f32 to vector<16x128xf32>
    %11 = arith.minimumf %3, %10 : vector<16x128xf32>
    %12 = arith.subf %11, %9 : vector<16x128xf32>
    %cst_5 = arith.constant 0.000000e+00 : f32
    %13 = vector.broadcast %cst_5 : f32 to vector<16x128xf32>
    %14 = arith.cmpf oge, %3, %13 : vector<16x128xf32>
    %cst_6 = arith.constant 1.000000e+00 : f32
    %15 = vector.broadcast %cst_6 : f32 to vector<16x128xf32>
    %16 = arith.select %14, %8, %15 : vector<16x128xi1>, vector<16x128xf32>
    %cst_7 = arith.constant 1.000000e+00 : f32
    %17 = vector.broadcast %cst_7 : f32 to vector<16x128xf32>
    %18 = arith.addf %17, %8 : vector<16x128xf32>
    %19 = tpu.reciprocal %18 : vector<16x128xf32> -> vector<16x128xf32>
    %20 = arith.mulf %16, %19 : vector<16x128xf32>
    %21 = arith.mulf %20, %20 : vector<16x128xf32>
    %22 = arith.mulf %21, %12 : vector<16x128xf32>
    %23 = math.exp %22 : vector<16x128xf32>
    %24 = math.log1p %23 : vector<16x128xf32>
    %25 = arith.mulf %22, %4 : vector<16x128xf32>
    %26 = arith.subf %24, %25 : vector<16x128xf32>
    %c0_8 = arith.constant 0 : index
    %c0_9 = arith.constant 0 : index
    %27 = vector.load %arg3[%c0_8, %c0_9] : memref<8x128xf32, #tpu.memory_space<vmem>>, vector<8x128xf32>
    %28 = vector.shape_cast %26 : vector<16x128xf32> to vector<2x8x128xf32>
    %cst_10 = arith.constant dense<0.000000e+00> : vector<8x128xf32>
    %29 = vector.multi_reduction <add>, %28, %cst_10 [0] : vector<2x8x128xf32> to vector<8x128xf32>
    %30 = arith.addf %27, %29 : vector<8x128xf32>
    %c0_11 = arith.constant 0 : index
    %c0_12 = arith.constant 0 : index
    %31 = vector.load %arg3[%c0_11, %c0_12] : memref<8x128xf32, #tpu.memory_space<vmem>>, vector<8x128xf32>
    tpu.vector_store %arg3[%c0_11, %c0_12], %30 {strides = array<i32>} : memref<8x128xf32, #tpu.memory_space<vmem>>, vector<8x128xf32>,
    return
  }
  func.func @transform_0(%arg0: i32) -> (i32, i32) {
    %c0_i32 = arith.constant 0 : i32
    %c0_i32_0 = arith.constant 0 : i32
    return %arg0, %c0_i32 : i32, i32
  }
  func.func @transform_1(%arg0: i32) -> (i32, i32) {
    %c0_i32 = arith.constant 0 : i32
    %c0_i32_0 = arith.constant 0 : i32
    return %arg0, %c0_i32 : i32, i32
  }
  func.func @transform_2(%arg0: i32) -> (i32, i32) {
    %c0_i32 = arith.constant 0 : i32
    %c0_i32_0 = arith.constant 0 : i32
    %c0_i32_1 = arith.constant 0 : i32
    return %c0_i32, %c0_i32_0 : i32, i32
  }
}

</mosaic_0001>

<llo_original>
// kernel: tpu_custom_call.1
$region0: #{tpu_custom_call.1}
  #allocation0 [shape = 'u32[]', space=smem, size = 0x4, offset = 0x4, fixed_abs, tag = 'smem constant byte address 0x4 - core index']
  #allocation1 [shape = 'u32[144,128]{1,0:T(1,128)}', space=vmem, size = 0x12000, scoped, tag = 'internal scratch']
  %s0 = inlined_call_operand.hbm [shape: f32[16,128], index: 0, kind: input, shape index: {}]
  %s1 = inlined_call_operand.hbm [shape: f32[16,128], index: 1, kind: input, shape index: {}]
  %s2 = inlined_call_operand.hbm [shape: f32[8,128], index: 2, kind: output, shape index: {}]
  %s3 = sld [smem:[#allocation0]]
  $region30: #{tpu_custom_call.1} parent=0
    _
  %s5 = ssub.s32 1, %s3
  %s6 = scalar_select 0, %s5, %s3
  $region1: #{tpu_custom_call.1} parent=0
    #allocation2 [shape = 'u8[8192]{0}', space=vmem, size = 0x2000, scoped, tag = 'input window, operand 0, single buffered']
    #allocation3 [shape = 's32[1]{0}', space=sflag, size = 0x4, scoped, tag = 'scoped memory for tpu_custom_call.1']
    #allocation4 [shape = 's32[1]{0}', space=sflag, size = 0x4, scoped, tag = 'scoped memory for tpu_custom_call.1']
    #allocation5 [shape = 'u8[8192]{0}', space=vmem, size = 0x2000, scoped, tag = 'input window, operand 1, single buffered']
    #allocation6 [shape = 's32[1]{0}', space=sflag, size = 0x4, scoped, tag = 'scoped memory for tpu_custom_call.1']
    #allocation7 [shape = 'u8[4096]{0}', space=vmem, size = 0x1000, scoped, tag = 'output window, operand 0, single buffered']
    %7 = vsyncpa [#allocation3], 0
    %8 = vsyncpa [#allocation6], 0
    %9 = vsyncpa [#allocation4], 0
    // Predicated region
    $region2: #{tpu_custom_call.1} parent=1 // pred_check
      _
    $region3: #{tpu_custom_call.1} parent=1 // pred_check_branch
      %11 = sbr.rel (0) target = $region5
    $region4: #{tpu_custom_call.1} parent=1 // pred_region
      %s13 = ssub.s32 256, 256
      %14 = vsyncadd [#allocation3], %s13
      %s15 = sshll.u32 [#allocation2], 4
      %s16 = int_to_ptr.vmem [resolvable:$true] %s15
      %21 = dma.hbm_to_vmem [thread:$0]  %s0, 256, %s16, [#allocation3], 128, 128, 8
    $region5: #{tpu_custom_call.1} parent=1 // pred_fallthru
      _
    // Predicated region
    $region6: #{tpu_custom_call.1} parent=1 // pred_check
      _
    $region7: #{tpu_custom_call.1} parent=1 // pred_check_branch
      %23 = sbr.rel (0) target = $region9
    $region8: #{tpu_custom_call.1} parent=1 // pred_region
      %s25 = ssub.s32 256, 256
      %26 = vsyncadd [#allocation6], %s25
      %s27 = sshll.u32 [#allocation5], 4
      %s28 = int_to_ptr.vmem [resolvable:$true] %s27
      %33 = dma.hbm_to_vmem [thread:$0]  %s1, 256, %s28, [#allocation6], 128, 128, 8
    $region9: #{tpu_custom_call.1} parent=1 // pred_fallthru
      _
    // Predicated region
    $region10: #{tpu_custom_call.1} parent=1 // pred_check
      _
    $region11: #{tpu_custom_call.1} parent=1 // pred_check_branch
      %35 = sbr.rel (0) target = $region13
    $region12: #{tpu_custom_call.1} parent=1 // pred_region
      %36 = dma.done [#allocation3], 256
    $region13: #{tpu_custom_call.1} parent=1 // pred_fallthru
      _
    // Predicated region
    $region14: #{tpu_custom_call.1} parent=1 // pred_check
      _
    $region15: #{tpu_custom_call.1} parent=1 // pred_check_branch
      %38 = sbr.rel (0) target = $region17
    $region16: #{tpu_custom_call.1} parent=1 // pred_region
      %39 = dma.done [#allocation6], 256
    $region17: #{tpu_custom_call.1} parent=1 // pred_fallthru
      _
    %p40 = scmp.eq.s32.totalorder 0, 0
    // Predicated region
    $region18: #{tpu_custom_call.1} parent=1 // pred_check
      %p41 = pneg %p40
    $region19: #{tpu_custom_call.1} parent=1 // pred_check_branch
      %43 = sbr.rel (%p41) target = $region21
    $region20: #{tpu_custom_call.1} parent=1 // pred_region
      %44 = vst [vmem:[#allocation7] sm:$0xff] 0.0
    $region21: #{tpu_custom_call.1} parent=1 // pred_fallthru
      _
    %v45 = vld [vmem:[#allocation2] sm:$0xff]
    %v46 = vld [vmem:[#allocation2 + $0x8] sm:$0xff]
    %v47 = vld [vmem:[#allocation5] sm:$0xff]
    %v48 = vld [vmem:[#allocation5 + $0x8] sm:$0xff]
    %v49 = vand.u32 2147483647, %v45
    %v50 = vand.u32 2147483647, %v46
    %v51 = vsub.f32 0.0, %v49
    %v52 = vsub.f32 0.0, %v50
    %v53 = vmul.f32 %v51, 1.442695
    %v54 = vpow.pop %v53
    %v55 = vmul.f32 %v52, 1.442695
    %v56 = vpow.pop %v55
    %v57 = vadd.f32 %v54, 1.0
    %v58 = vlog2.pop %v57
    %v59 = vmul.f32 %v58, 0.6931472
    %v60 = vmul.f32 -0.5, %v54
    %v61 = vadd.f32 %v60, 1.0
    %v62 = vmul.f32 %v61, %v54
    %v63 = vand.u32 2147483647, %v54
    %vm64 = vcmp.lt.f32.partialorder %v63, 0.0004427343
    %v65 = vsel %vm64, %v62, %v59
    %v66 = vadd.f32 %v56, 1.0
    %v67 = vlog2.pop %v66
    %v68 = vmul.f32 %v67, 0.6931472
    %v69 = vmul.f32 -0.5, %v56
    %v70 = vadd.f32 %v69, 1.0
    %v71 = vmul.f32 %v70, %v56
    %v72 = vand.u32 2147483647, %v56
    %vm73 = vcmp.lt.f32.partialorder %v72, 0.0004427343
    %v74 = vsel %vm73, %v71, %v68
    %v75 = vmin.f32 %v45, 0.0
    %v76 = vmin.f32 %v46, 0.0
    %v77 = vsub.f32 %v75, %v65
    %v78 = vsub.f32 %v76, %v74
    %vm79 = vcmp.ge.f32.partialorder %v45, 0.0
    %vm80 = vcmp.ge.f32.partialorder %v46, 0.0
    %v81 = vsel %vm79, %v54, 1.0
    %v82 = vsel %vm80, %v56, 1.0
    %v83 = vadd.f32 %v54, 1.0
    %v84 = vadd.f32 %v56, 1.0
    %v85 = vrcp.pop %v83
    %v86 = vrcp.pop %v84
    %v87 = vmul.f32 %v81, %v85
    %v88 = vmul.f32 %v82, %v86
    %v89 = vmul.f32 %v87, %v87
    %v90 = vmul.f32 %v88, %v88
    %v91 = vmul.f32 %v89, %v77
    %v92 = vmul.f32 %v90, %v78
    %v93 = vmul.f32 %v91, 1.442695
    %v94 = vpow.pop %v93
    %v95 = vmul.f32 %v92, 1.442695
    %v96 = vpow.pop %v95
    %v97 = vadd.f32 %v94, 1.0
    %v98 = vlog2.pop %v97
    %v99 = vmul.f32 %v98, 0.6931472
    %v100 = vmul.f32 -0.5, %v94
    %v101 = vadd.f32 %v100, 1.0
    %v102 = vmul.f32 %v101, %v94
    %v103 = vand.u32 2147483647, %v94
    %vm104 = vcmp.lt.f32.partialorder %v103, 0.0004427343
    %v105 = vsel %vm104, %v102, %v99
    %v106 = vadd.f32 %v96, 1.0
    %v107 = vlog2.pop %v106
    %v108 = vmul.f32 %v107, 0.6931472
    %v109 = vmul.f32 -0.5, %v96
    %v110 = vadd.f32 %v109, 1.0
    %v111 = vmul.f32 %v110, %v96
    %v112 = vand.u32 2147483647, %v96
    %vm113 = vcmp.lt.f32.partialorder %v112, 0.0004427343
    %v114 = vsel %vm113, %v111, %v108
    %v115 = vmul.f32 %v91, %v47
    %v116 = vmul.f32 %v92, %v48
    %v117 = vsub.f32 %v105, %v115
    %v118 = vsub.f32 %v114, %v116
    %v119 = vld [vmem:[#allocation7] sm:$0xff]
    %v120 = vadd.f32 %v117, %v118
    %v121 = vadd.f32 %v119, %v120
    %122 = vst [vmem:[#allocation7] sm:$0xff] %v121
    // Predicated region
    $region22: #{tpu_custom_call.1} parent=1 // pred_check
      _
    $region23: #{tpu_custom_call.1} parent=1 // pred_check_branch
      %124 = sbr.rel (0) target = $region25
    $region24: #{tpu_custom_call.1} parent=1 // pred_region
      %s126 = ssub.s32 128, 128
      %127 = vsyncadd [#allocation4], %s126
      %s129 = sshll.u32 [#allocation7], 4
      %s130 = int_to_ptr.vmem [resolvable:$true] %s129
      %132 = dma.vmem_to_hbm [thread:$0]  %s130, 128, %s2, [#allocation4]
    $region25: #{tpu_custom_call.1} parent=1 // pred_fallthru
      _
    // Predicated region
    $region26: #{tpu_custom_call.1} parent=1 // pred_check
      _
    $region27: #{tpu_custom_call.1} parent=1 // pred_check_branch
      %134 = sbr.rel (0) target = $region29
    $region28: #{tpu_custom_call.1} parent=1 // pred_region
      %135 = dma.done [#allocation4], 128
    $region29: #{tpu_custom_call.1} parent=1 // pred_fallthru
      _
    %136 = vsyncpa [#allocation3], 1
    %137 = vsyncpa [#allocation6], 1
    %138 = vsyncpa [#allocation4], 1

</llo_original>
